<compile_context>
chip_gen: v7x
topology: tpu7x:2x2x1
jax: 0.10.0
libtpu: 0.0.40
codegen_flags: <defaults>
</compile_context>

<pallas_src>
import functools

import jax
import jax.numpy as jnp
from jax.experimental import pallas as pl
from jax.experimental.pallas import tpu as pltpu


# ----------------------------------------------------------------------------
# Pallas kernel: one lane-dense tile of edges
# ----------------------------------------------------------------------------
def _cosine_sim_kernel(thresh, lT_ref, rT_ref, w_ref, o_ref):
    # lT_ref/rT_ref: (D, BLOCK_E) edge-endpoint features, edges on lanes.
    # w_ref        : (H, D) per-head metric weights.
    # o_ref        : (1, BLOCK_E) thresholded mean cosine similarity.
    l = lT_ref[...]                     # (D, Te)
    r = rT_ref[...]                     # (D, Te)
    w = w_ref[...]                      # (H, D)
    w2 = w * w                          # elementwise: (l*w)·(r*w) = (w^2)·(l⊙r)

    dot = jnp.dot(w2, l * r, preferred_element_type=jnp.float32)   # (H, Te)
    na2 = jnp.dot(w2, l * l, preferred_element_type=jnp.float32)   # (H, Te)
    nb2 = jnp.dot(w2, r * r, preferred_element_type=jnp.float32)   # (H, Te)

    eps = 1e-8
    # cos = dot / max(||a||*||b||, eps)  ==  dot * rsqrt(max(na2*nb2, eps^2))
    inv = jax.lax.rsqrt(jnp.maximum(na2 * nb2, eps * eps))          # EUP
    sim = jnp.mean(dot * inv, axis=0, keepdims=True)                # (1, Te)
    o_ref[...] = jnp.where(sim < thresh, 0.0, sim)


# ----------------------------------------------------------------------------
# wrapper
# ----------------------------------------------------------------------------
def graph_generator(metric_w, left_features, right_features, edge_index,
                    similarity_threshold, block_e=256):
    """Equivalent of GraphGenerator.forward(left, right, edge_index)."""
    E = edge_index.shape[1]
    D = left_features.shape[1]
    H = metric_w.shape[0]

    # data-dependent gather of edge endpoints (JAX glue)
    l = jnp.take(left_features, edge_index[0], axis=0).astype(jnp.float32)   # (E, D)
    r = jnp.take(right_features, edge_index[1], axis=0).astype(jnp.float32)  # (E, D)

    # lane-dense layout: edges on the lane (last) axis, padded to a tile multiple
    e_pad = pl.cdiv(E, block_e) * block_e
    lT = jnp.pad(l, ((0, e_pad - E), (0, 0))).T                               # (D, e_pad)
    rT = jnp.pad(r, ((0, e_pad - E), (0, 0))).T                               # (D, e_pad)

    sim_row = pl.pallas_call(
        functools.partial(_cosine_sim_kernel, float(similarity_threshold)),
        grid=(e_pad // block_e,),
        in_specs=[
            pl.BlockSpec((D, block_e), lambda i: (0, i)),
            pl.BlockSpec((D, block_e), lambda i: (0, i)),
            pl.BlockSpec((H, D), lambda i: (0, 0)),
        ],
        out_specs=pl.BlockSpec((1, block_e), lambda i: (0, i)),
        out_shape=jax.ShapeDtypeStruct((1, e_pad), jnp.float32),
        compiler_params=pltpu.CompilerParams(
            dimension_semantics=("parallel",)),
    )(lT, rT, metric_w.astype(jnp.float32))

    return sim_row[0, :E]


# ----------------------------------------------------------------------------
# main
# ----------------------------------------------------------------------------
if __name__ == "__main__":
    import numpy as np

    FEATURE_DIM = 32
    NUM_HEADS = 4
    THRESH = 0.1
    N_LEFT, N_RIGHT = 16, 16
    NUM_EDGES = 300            # not a multiple of the tile -> exercises padding

    key = jax.random.PRNGKey(0)
    k1, k2, k3, k4, kw = jax.random.split(key, 5)

    left_features = jax.random.normal(k1, (N_LEFT, FEATURE_DIM), jnp.float32)
    right_features = jax.random.normal(k2, (N_RIGHT, FEATURE_DIM), jnp.float32)
    src = jax.random.randint(k3, (NUM_EDGES,), 0, N_LEFT, jnp.int32)
    dst = jax.random.randint(k4, (NUM_EDGES,), 0, N_RIGHT, jnp.int32)
    edge_index = jnp.stack([src, dst])

    # MetricCalculator weights: one (1, D) xavier_uniform weight per head.
    bound = (6.0 / (1 + FEATURE_DIM)) ** 0.5
    metric_w = jax.random.uniform(kw, (NUM_HEADS, FEATURE_DIM), jnp.float32,
                                  -bound, bound)

    sim = graph_generator(metric_w, left_features, right_features,
                          edge_index, THRESH, block_e=256)
    sim = jax.block_until_ready(sim)
    assert sim.shape == (NUM_EDGES,)

    # pure-JAX reference (mirrors the PyTorch module)
    l = left_features[edge_index[0]]
    r = right_features[edge_index[1]]
    acc = jnp.zeros((NUM_EDGES,), jnp.float32)
    for h in range(NUM_HEADS):
        a = l * metric_w[h]
        b = r * metric_w[h]
        dot = jnp.sum(a * b, axis=1)
        denom = jnp.maximum(jnp.linalg.norm(a, axis=1) *
                            jnp.linalg.norm(b, axis=1), 1e-8)
        acc = acc + dot / denom
    ref_pre = acc / NUM_HEADS
    ref = jnp.where(ref_pre < THRESH, 0.0, ref_pre)

    sim_np = np.asarray(sim)
    ref_np = np.asarray(ref)
    # ignore edges whose similarity sits exactly on the threshold boundary
    ok = np.abs(np.asarray(ref_pre) - THRESH) > 1e-3
    max_err = float(np.max(np.abs(sim_np - ref_np)[ok]))
    assert np.isfinite(sim_np).all()
    assert max_err < 1e-3, f"max abs error {max_err}"

    print("KERNEL_OK")
</pallas_src>

<mosaic_0001>
module attributes {stable_mosaic.version = 11 : i64} {
  func.func @_cosine_sim_kernel(%arg0: i32, %arg1: memref<32x256xf32, #tpu.memory_space<vmem>>, %arg2: memref<32x256xf32, #tpu.memory_space<vmem>>, %arg3: memref<4x32xf32, #tpu.memory_space<vmem>>, %arg4: memref<1x256xf32, #tpu.memory_space<vmem>>) attributes {dimension_semantics = [#tpu.dimension_semantics<parallel>], iteration_bounds = array<i64: 2>, scalar_prefetch = 0 : i64, scratch_operands = 0 : i64, tpu.core_type = #tpu.core_type<tc>, window_params = [{transform_indices = @transform_0, window_bounds = array<i64: 32, 256>}, {transform_indices = @transform_1, window_bounds = array<i64: 32, 256>}, {pipeline_mode = #tpu.pipeline_mode<synchronous>, transform_indices = @transform_2, window_bounds = array<i64: 4, 32>}, {transform_indices = @transform_3, window_bounds = array<i64: 1, 256>}]} {
    %c0 = arith.constant 0 : index
    %c0_0 = arith.constant 0 : index
    %0 = vector.load %arg1[%c0, %c0_0] : memref<32x256xf32, #tpu.memory_space<vmem>>, vector<32x256xf32>
    %c0_1 = arith.constant 0 : index
    %c0_2 = arith.constant 0 : index
    %1 = vector.load %arg2[%c0_1, %c0_2] : memref<32x256xf32, #tpu.memory_space<vmem>>, vector<32x256xf32>
    %c0_3 = arith.constant 0 : index
    %c0_4 = arith.constant 0 : index
    %2 = vector.load %arg3[%c0_3, %c0_4] : memref<4x32xf32, #tpu.memory_space<vmem>>, vector<4x32xf32>
    %3 = arith.mulf %2, %2 : vector<4x32xf32>
    %4 = arith.mulf %0, %1 : vector<32x256xf32>
    %cst = arith.constant dense<0.000000e+00> : vector<4x256xf32>
    %5 = tpu.matmul %3, %4, %cst {dimension_numbers = #tpu.dot_dimension_numbers<[1], [0], [0], [1], [0, 0, 1, 1], [], []>} : vector<4x32xf32>, vector<32x256xf32>, vector<4x256xf32> -> vector<4x256xf32>
    %6 = arith.mulf %0, %0 : vector<32x256xf32>
    %cst_5 = arith.constant dense<0.000000e+00> : vector<4x256xf32>
    %7 = tpu.matmul %3, %6, %cst_5 {dimension_numbers = #tpu.dot_dimension_numbers<[1], [0], [0], [1], [0, 0, 1, 1], [], []>} : vector<4x32xf32>, vector<32x256xf32>, vector<4x256xf32> -> vector<4x256xf32>
    %8 = arith.mulf %1, %1 : vector<32x256xf32>
    %cst_6 = arith.constant dense<0.000000e+00> : vector<4x256xf32>
    %9 = tpu.matmul %3, %8, %cst_6 {dimension_numbers = #tpu.dot_dimension_numbers<[1], [0], [0], [1], [0, 0, 1, 1], [], []>} : vector<4x32xf32>, vector<32x256xf32>, vector<4x256xf32> -> vector<4x256xf32>
    %10 = arith.mulf %7, %9 : vector<4x256xf32>
    %cst_7 = arith.constant 1.000000e-16 : f32
    %11 = vector.broadcast %cst_7 : f32 to vector<4x256xf32>
    %12 = arith.maximumf %10, %11 : vector<4x256xf32>
    %13 = math.rsqrt %12 : vector<4x256xf32>
    %14 = arith.mulf %5, %13 : vector<4x256xf32>
    %cst_8 = arith.constant dense<0.000000e+00> : vector<256xf32>
    %15 = vector.multi_reduction <add>, %14, %cst_8 [0] : vector<4x256xf32> to vector<256xf32>
    %16 = vector.shape_cast %15 : vector<256xf32> to vector<1x256xf32>
    %cst_9 = arith.constant 4.000000e+00 : f32
    %17 = vector.broadcast %cst_9 : f32 to vector<1x256xf32>
    %18 = arith.divf %16, %17 : vector<1x256xf32>
    %cst_10 = arith.constant 1.000000e-01 : f32
    %19 = vector.broadcast %cst_10 : f32 to vector<1x256xf32>
    %20 = arith.cmpf olt, %18, %19 : vector<1x256xf32>
    %cst_11 = arith.constant 0.000000e+00 : f32
    %21 = vector.broadcast %cst_11 : f32 to vector<1x256xf32>
    %22 = arith.select %20, %21, %18 : vector<1x256xi1>, vector<1x256xf32>
    %c0_12 = arith.constant 0 : index
    %c0_13 = arith.constant 0 : index
    %23 = vector.load %arg4[%c0_12, %c0_13] : memref<1x256xf32, #tpu.memory_space<vmem>>, vector<1x256xf32>
    tpu.vector_store %arg4[%c0_12, %c0_13], %22 {strides = array<i32>} : memref<1x256xf32, #tpu.memory_space<vmem>>, vector<1x256xf32>,
    return
  }
  func.func @transform_0(%arg0: i32) -> (i32, i32) {
    %c0_i32 = arith.constant 0 : i32
    %c0_i32_0 = arith.constant 0 : i32
    return %c0_i32, %arg0 : i32, i32
  }
  func.func @transform_1(%arg0: i32) -> (i32, i32) {
    %c0_i32 = arith.constant 0 : i32
    %c0_i32_0 = arith.constant 0 : i32
    return %c0_i32, %arg0 : i32, i32
  }
  func.func @transform_2(%arg0: i32) -> (i32, i32) {
    %c0_i32 = arith.constant 0 : i32
    %c0_i32_0 = arith.constant 0 : i32
    %c0_i32_1 = arith.constant 0 : i32
    return %c0_i32, %c0_i32_0 : i32, i32
  }
  func.func @transform_3(%arg0: i32) -> (i32, i32) {
    %c0_i32 = arith.constant 0 : i32
    %c0_i32_0 = arith.constant 0 : i32
    return %c0_i32, %arg0 : i32, i32
  }
}

</mosaic_0001>

<llo_original>
// kernel: tpu_custom_call.1
$region0: #{tpu_custom_call.1}
  #allocation0 [shape = 'u32[]', space=smem, size = 0x4, offset = 0x4, fixed_abs, tag = 'smem constant byte address 0x4 - core index']
  #allocation1 [shape = 'u32[144,128]{1,0:T(1,128)}', space=vmem, size = 0x12000, scoped, tag = 'internal scratch']
  %s0 = inlined_call_operand.hbm [shape: f32[32,512], index: 0, kind: input, shape index: {}]
  %s1 = inlined_call_operand.hbm [shape: f32[32,512], index: 1, kind: input, shape index: {}]
  %s2 = inlined_call_operand.vmem [shape: f32[4,32], index: 2, kind: input, shape index: {}]
  %s3 = inlined_call_operand.hbm [shape: f32[1,512], index: 3, kind: output, shape index: {}]
  %s4 = sld [smem:[#allocation0]]
  $region53: #{tpu_custom_call.1} parent=0
    _
  %s6 = ssub.s32 1, %s4
  %s7 = scalar_select 0, %s6, %s4
  $region1: #{tpu_custom_call.1} parent=0
    #allocation2 [shape = 'u8[65536]{0}', space=vmem, size = 0x10000, scoped, tag = 'input window, operand 0']
    #allocation3 [shape = 's32[2]{0}', space=sflag, size = 0x8, scoped, tag = 'scoped memory for tpu_custom_call.1']
    #allocation4 [shape = 's32[2]{0}', space=sflag, size = 0x8, scoped, tag = 'scoped memory for tpu_custom_call.1']
    #allocation5 [shape = 'u8[65536]{0}', space=vmem, size = 0x10000, scoped, tag = 'input window, operand 1']
    #allocation6 [shape = 's32[2]{0}', space=sflag, size = 0x8, scoped, tag = 'scoped memory for tpu_custom_call.1']
    #allocation7 [shape = 'u8[2048]{0}', space=vmem, size = 0x800, scoped, tag = 'output window, operand 0']
    %8 = vsyncpa [#allocation3], 0
    %s9 = scalar_lea.sflag [#allocation3], 1
    %10 = vsyncpa %s9, 0
    %11 = vsyncpa [#allocation6], 0
    %s12 = scalar_lea.sflag [#allocation6], 1
    %13 = vsyncpa %s12, 0
    %14 = vsyncpa [#allocation4], 0
    %s15 = scalar_lea.sflag [#allocation4], 1
    %16 = vsyncpa %s15, 0
    loop: start=0, step=1, limit=4
    $region2: #{tpu_custom_call.1} parent=1 // loop_pre_header
      _
    $region3: #{tpu_custom_call.1} parent=1 // loop_header
      %s18 = sphi 0, %s22
      %p19 = scmp.ge.s32.totalorder %s18, 4
      %s28 = sphi 0, %s30
      %s31 = sphi 0, %s28
      %s32 = sphi 0, %s31
      %s48 = sphi 0, %s32
      %s54 = sphi 0, %s56
      %s57 = sphi 0, %s54
      %s58 = sphi 0, %s57
      %s74 = sphi 0, %s58
      %s78 = sphi 0, %s78
      %s80 = sphi 0, %s78
      %s81 = sphi 0, %s80
      %s95 = sphi 0, %s81
      %s101 = sphi 0, %s103
      %s104 = sphi 0, %s101
      %s105 = sphi 0, %s104
      %s121 = sphi 0, %s105
    $region4: #{tpu_custom_call.1} parent=1 // loop_header_branch
      %21 = sbr.rel (%p19) target = $region8
    $region5: #{tpu_custom_call.1} parent=1 // loop_body
      %s23 = ssub.s32 %s18, 1
      %s24 = ssub.s32 %s18, 2
      %s25 = sadd.s32 %s18, 1
      %s26 = ssub.s32 %s18, %s25
      %p27 = scmp.eq.s32.totalorder %s26, 0
      %s29 = sadd.s32 %s28, 1
      %s30 = scalar_select %p27, %s28, %s29
      %p33 = pneg %p27
      %p34 = scmp.eq.s32.totalorder %s18, 1
      %p35 = por %p33, %p34
      %p36 = scmp.ne.s32.totalorder %s28, %s31
      %p37 = scmp.eq.s32.totalorder %s18, 0
      %p38 = por %p36, %p37
      %p39 = scmp.ne.s32.totalorder %s28, %s31
      %p40 = scmp.eq.s32.totalorder %s23, 1
      %p41 = por %p39, %p40
      %p42 = scmp.ne.s32.totalorder %s31, %s32
      %p43 = scmp.eq.s32.totalorder %s23, 0
      %p44 = por %p42, %p43
      %p45 = scmp.ne.s32.totalorder %s31, %s32
      %p46 = scmp.eq.s32.totalorder %s24, 1
      %p47 = por %p45, %p46
      %p49 = scmp.ne.s32.totalorder %s32, %s48
      %p50 = scmp.eq.s32.totalorder %s24, 0
      %p51 = por %p49, %p50
      %s52 = ssub.s32 %s18, %s25
      %p53 = scmp.eq.s32.totalorder %s52, 0
      %s55 = sadd.s32 %s54, 1
      %s56 = scalar_select %p53, %s54, %s55
      %p59 = pneg %p53
      %p60 = scmp.eq.s32.totalorder %s18, 1
      %p61 = por %p59, %p60
      %p62 = scmp.ne.s32.totalorder %s54, %s57
      %p63 = scmp.eq.s32.totalorder %s18, 0
      %p64 = por %p62, %p63
      %p65 = scmp.ne.s32.totalorder %s54, %s57
      %p66 = scmp.eq.s32.totalorder %s23, 1
      %p67 = por %p65, %p66
      %p68 = scmp.ne.s32.totalorder %s57, %s58
      %p69 = scmp.eq.s32.totalorder %s23, 0
      %p70 = por %p68, %p69
      %p71 = scmp.ne.s32.totalorder %s57, %s58
      %p72 = scmp.eq.s32.totalorder %s24, 1
      %p73 = por %p71, %p72
      %p75 = scmp.ne.s32.totalorder %s58, %s74
      %p76 = scmp.eq.s32.totalorder %s24, 0
      %p77 = por %p75, %p76
      %s79 = sadd.s32 %s78, 1
      %p82 = scmp.eq.s32.totalorder %s18, 1
      %p83 = scmp.ne.s32.totalorder %s78, %s80
      %p84 = scmp.eq.s32.totalorder %s18, 0
      %p85 = por %p83, %p84
      %p86 = scmp.ne.s32.totalorder %s78, %s80
      %p87 = scmp.eq.s32.totalorder %s23, 1
      %p88 = por %p86, %p87
      %p89 = scmp.ne.s32.totalorder %s80, %s81
      %p90 = scmp.eq.s32.totalorder %s23, 0
      %p91 = por %p89, %p90
      %p92 = scmp.ne.s32.totalorder %s80, %s81
      %p93 = scmp.eq.s32.totalorder %s24, 1
      %p94 = por %p92, %p93
      %p96 = scmp.ne.s32.totalorder %s81, %s95
      %p97 = scmp.eq.s32.totalorder %s24, 0
      %p98 = por %p96, %p97
      %s99 = ssub.s32 %s18, %s25
      %p100 = scmp.eq.s32.totalorder %s99, 0
      %s102 = sadd.s32 %s101, 1
      %s103 = scalar_select %p100, %s101, %s102
      %p106 = pneg %p100
      %p107 = scmp.eq.s32.totalorder %s18, 1
      %p108 = por %p106, %p107
      %p109 = scmp.ne.s32.totalorder %s101, %s104
      %p110 = scmp.eq.s32.totalorder %s18, 0
      %p111 = por %p109, %p110
      %p112 = scmp.ne.s32.totalorder %s101, %s104
      %p113 = scmp.eq.s32.totalorder %s23, 1
      %p114 = por %p112, %p113
      %p115 = scmp.ne.s32.totalorder %s104, %s105
      %p116 = scmp.eq.s32.totalorder %s23, 0
      %p117 = por %p115, %p116
      %p118 = scmp.ne.s32.totalorder %s104, %s105
      %p119 = scmp.eq.s32.totalorder %s24, 1
      %p120 = por %p118, %p119
      %p122 = scmp.ne.s32.totalorder %s105, %s121
      %p123 = scmp.eq.s32.totalorder %s24, 0
      %p124 = por %p122, %p123
      %p125 = scmp.le.s32.totalorder 1, %s18
      %p126 = scmp.lt.s32.totalorder %s18, 3
      %p127 = pnand %p125, %p126
      %p128 = pneg %p127
      // Predicated region
      $region9: #{tpu_custom_call.1} parent=5 // pred_check
        _
      $region10: #{tpu_custom_call.1} parent=5 // pred_check_branch
        %130 = sbr.rel (%p127) target = $region12
      $region11: #{tpu_custom_call.1} parent=5 // pred_region
        %s131 = ssub.s32 %s18, 1
        // Predicated region
        $region13: #{tpu_custom_call.1} parent=11 // pred_check
          %p132 = pneg %p91
        $region14: #{tpu_custom_call.1} parent=11 // pred_check_branch
          %134 = sbr.rel (%p132) target = $region16
        $region15: #{tpu_custom_call.1} parent=11 // pred_region
          _
        $region16: #{tpu_custom_call.1} parent=11 // pred_fallthru
          _
      $region12: #{tpu_custom_call.1} parent=5 // pred_fallthru
        _
      %p135 = scmp.lt.s32.totalorder %s18, 2
      // Predicated region
      $region17: #{tpu_custom_call.1} parent=5 // pred_check
        %p136 = pneg %p135
      $region18: #{tpu_custom_call.1} parent=5 // pred_check_branch
        %138 = sbr.rel (%p136) target = $region20
      $region19: #{tpu_custom_call.1} parent=5 // pred_region
        // Predicated region
        $region21: #{tpu_custom_call.1} parent=19 // pred_check
          %p139 = pneg %p38
        $region22: #{tpu_custom_call.1} parent=19 // pred_check_branch
          %141 = sbr.rel (%p139) target = $region24
        $region23: #{tpu_custom_call.1} parent=19 // pred_region
          %s142 = sand.u32 %s28, 1
          %s143 = scalar_lea.sflag [#allocation3], %s142
          %s144 = sand.u32 %s28, 1
          %s145 = smul.addr %s144, 64
          %s146 = scalar_lea.vmem [#allocation2], %s145
          %s147 = smul.u32 2, %s18
          %s149 = ssub.s32 1024, 1024
          %150 = vsyncadd %s143, %s149
          %s151 = smul.addr %s147, 128
          %s152 = scalar_lea.hbm %s0, %s151
          %s153 = sshll.u32 %s146, 4
          %s154 = int_to_ptr.vmem [resolvable:$true] %s153
          %159 = dma.hbm_to_vmem [thread:$0]  %s152, 1024, %s154, %s143, 512, 256, 16
        $region24: #{tpu_custom_call.1} parent=19 // pred_fallthru
          _
        // Predicated region
        $region25: #{tpu_custom_call.1} parent=19 // pred_check
          %p160 = pneg %p64
        $region26: #{tpu_custom_call.1} parent=19 // pred_check_branch
          %162 = sbr.rel (%p160) target = $region28
        $region27: #{tpu_custom_call.1} parent=19 // pred_region
          %s163 = sand.u32 %s54, 1
          %s164 = scalar_lea.sflag [#allocation6], %s163
          %s165 = sand.u32 %s54, 1
          %s166 = smul.addr %s165, 64
          %s167 = scalar_lea.vmem [#allocation5], %s166
          %s168 = smul.u32 2, %s18
          %s170 = ssub.s32 1024, 1024
          %171 = vsyncadd %s164, %s170
          %s172 = smul.addr %s168, 128
          %s173 = scalar_lea.hbm %s1, %s172
          %s174 = sshll.u32 %s167, 4
          %s175 = int_to_ptr.vmem [resolvable:$true] %s174
          %180 = dma.hbm_to_vmem [thread:$0]  %s173, 1024, %s175, %s164, 512, 256, 16
        $region28: #{tpu_custom_call.1} parent=19 // pred_fallthru
          _
      $region20: #{tpu_custom_call.1} parent=5 // pred_fallthru
        _
      %p181 = scmp.le.s32.totalorder 1, %s18
      %p182 = scmp.lt.s32.totalorder %s18, 3
      %p183 = pnand %p181, %p182
      %p184 = pneg %p183
      // Predicated region
      $region29: #{tpu_custom_call.1} parent=5 // pred_check
        _
      $region30: #{tpu_custom_call.1} parent=5 // pred_check_branch
        %186 = sbr.rel (%p183) target = $region32
      $region31: #{tpu_custom_call.1} parent=5 // pred_region
        %s187 = ssub.s32 %s18, 1
        %s188 = sand.u32 %s31, 1
        %s189 = scalar_lea.sflag [#allocation3], %s188
        %s190 = sand.u32 %s31, 1
        %s191 = smul.addr %s190, 64
        %s192 = scalar_lea.vmem [#allocation2], %s191
        // Predicated region
        $region33: #{tpu_custom_call.1} parent=31 // pred_check
          %p193 = pneg %p44
        $region34: #{tpu_custom_call.1} parent=31 // pred_check_branch
          %195 = sbr.rel (%p193) target = $region36
        $region35: #{tpu_custom_call.1} parent=31 // pred_region
          %196 = dma.done %s189, 1024
        $region36: #{tpu_custom_call.1} parent=31 // pred_fallthru
          _
        %s197 = sand.u32 %s57, 1
        %s198 = scalar_lea.sflag [#allocation6], %s197
        %s199 = sand.u32 %s57, 1
        %s200 = smul.addr %s199, 64
        %s201 = scalar_lea.vmem [#allocation5], %s200
        // Predicated region
        $region37: #{tpu_custom_call.1} parent=31 // pred_check
          %p202 = pneg %p70
        $region38: #{tpu_custom_call.1} parent=31 // pred_check_branch
          %204 = sbr.rel (%p202) target = $region40
        $region39: #{tpu_custom_call.1} parent=31 // pred_region
          %205 = dma.done %s198, 1024
        $region40: #{tpu_custom_call.1} parent=31 // pred_fallthru
          _
        %s206 = sand.u32 %s31, 1
        %s207 = scalar_lea.sflag [#allocation3], %s206
        %s208 = sand.u32 %s31, 1
        %s209 = smul.addr %s208, 64
        %s210 = scalar_lea.vmem [#allocation2], %s209
        %p211 = pneg %p44
        %p212 = pneg %p41
        %s213 = sand.u32 %s57, 1
        %s214 = scalar_lea.sflag [#allocation6], %s213
        %s215 = sand.u32 %s57, 1
        %s216 = smul.addr %s215, 64
        %s217 = scalar_lea.vmem [#allocation5], %s216
        %p218 = pneg %p70
        %p219 = pneg %p67
        %p220 = pneg %p91
        %p221 = pneg %p88
        %p222 = pneg %p117
        %p223 = pneg %p114
        %s224 = sand.u32 %s104, 1
        %s225 = scalar_lea.sflag [#allocation4], %s224
        %s226 = sand.u32 %s104, 1
        %s227 = smul.addr %s226, 2
        %s228 = scalar_lea.vmem [#allocation7], %s227
        %s229 = smul.u32 2, %s23
        %s230 = smul.u32 2, %s23
        %s231 = smul.u32 2, %s23
        %v232 = vld [vmem:[%s192] sm:$0xff]
        %v233 = vld [vmem:[%s192 + $0x8] sm:$0xff]
        %v234 = vld [vmem:[%s192 + $0x10] sm:$0xff]
        %v235 = vld [vmem:[%s192 + $0x18] sm:$0xff]
        %v236 = vld [vmem:[%s192 + $0x20] sm:$0xff]
        %v237 = vld [vmem:[%s192 + $0x28] sm:$0xff]
        %v238 = vld [vmem:[%s192 + $0x30] sm:$0xff]
        %v239 = vld [vmem:[%s192 + $0x38] sm:$0xff]
        %v240 = vld [vmem:[%s201] sm:$0xff]
        %v241 = vld [vmem:[%s201 + $0x8] sm:$0xff]
        %v242 = vld [vmem:[%s201 + $0x10] sm:$0xff]
        %v243 = vld [vmem:[%s201 + $0x18] sm:$0xff]
        %v244 = vld [vmem:[%s201 + $0x20] sm:$0xff]
        %v245 = vld [vmem:[%s201 + $0x28] sm:$0xff]
        %v246 = vld [vmem:[%s201 + $0x30] sm:$0xff]
        %v247 = vld [vmem:[%s201 + $0x38] sm:$0xff]
        %v248 = vld [vmem:[%s2] sm:$0xf]
        %v249 = vmul.f32 %v248, %v248
        %v250 = vmul.f32 %v232, %v240
        %v251 = vmul.f32 %v233, %v241
        %v252 = vmul.f32 %v234, %v242
        %v253 = vmul.f32 %v235, %v243
        %v254 = vmul.f32 %v236, %v244
        %v255 = vmul.f32 %v237, %v245
        %v256 = vmul.f32 %v238, %v246
        %v257 = vmul.f32 %v239, %v247
        %vm258 = vcmask 261120
        %v260 = vsel %vm258, %v249, 0
        %262 = vmatprep.subr.mxu0 %v251
        %263 = vmatpush1.msra.mxu0 %v250
        %264 = vmatprep.subr.mxu0 %v253
        %265 = vmatpush1.msra.mxu0 %v252
        %266 = vmatprep.subr.mxu0 %v255
        %267 = vmatpush1.msra.mxu0 %v254
        %268 = vmatprep.subr.mxu0 %v257
        %269 = vmatpush1.msra.mxu0 %v256
        %270 = vmatprep.subr.mxu0 0.0
        %271 = vmatpush1.msra.mxu0 0.0
        %272 = vmatprep.subr.mxu0 0.0
        %273 = vmatpush1.msra.mxu0 0.0
        %274 = vmatprep.subr.mxu0 0.0
        %275 = vmatpush1.msra.mxu0 0.0
        %276 = vmatprep.subr.mxu0 0.0
        %277 = vmatpush1.msra.mxu0 0.0
        %278 = vmatprep.subr.mxu0 0.0
        %279 = vmatpush1.msra.mxu0 0.0
        %280 = vmatprep.subr.mxu0 0.0
        %281 = vmatpush1.msra.mxu0 0.0
        %282 = vmatprep.subr.mxu0 0.0
        %283 = vmatpush1.msra.mxu0 0.0
        %284 = vmatprep.subr.mxu0 0.0
        %285 = vmatpush1.msra.mxu0 0.0
        %286 = vmatprep.subr.mxu0 0.0
        %287 = vmatpush1.msra.mxu0 0.0
        %288 = vmatprep.subr.mxu0 0.0
        %289 = vmatpush1.msra.mxu0 0.0
        %290 = vmatprep.subr.mxu0 0.0
        %291 = vmatpush1.msra.mxu0 0.0
        %292 = vmatprep.subr.mxu0 0.0
        %293 = vmatpush1.msra.mxu0 0.0
        %294 = vmatprep.subr.mxu0 0.0
        %295 = vmatpush1.msra.mxu0 0.0
        %296 = vmatprep.subr.mxu0 0.0
        %297 = vmatpush1.msra.mxu0 0.0
        %298 = vmatprep.subr.mxu0 0.0
        %299 = vmatpush1.msra.mxu0 0.0
        %300 = vmatprep.subr.mxu0 0.0
        %301 = vmatpush1.msra.mxu0 0.0
        %302 = vmatprep.subr.mxu0 0.0
        %303 = vmatpush1.msra.mxu0 0.0
        %304 = vmatprep.subr.mxu0 0.0
        %305 = vmatpush1.msra.mxu0 0.0
        %306 = vmatprep.subr.mxu0 0.0
        %307 = vmatpush1.msra.mxu0 0.0
        %308 = vmatprep.subr.mxu0 0.0
        %309 = vmatpush1.msra.mxu0 0.0
        %310 = vmatprep.subr.mxu0 0.0
        %311 = vmatpush1.msra.mxu0 0.0
        %312 = vmatprep.subr.mxu0 0.0
        %313 = vmatpush1.msra.mxu0 0.0
        %314 = vmatprep.subr.mxu0 0.0
        %315 = vmatpush1.msra.mxu0 0.0
        %316 = vmatprep.subr.mxu0 0.0
        %317 = vmatpush1.msra.mxu0 0.0
        %318 = vmatprep.subr.mxu0 0.0
        %319 = vmatpush1.msra.mxu0 0.0
        %320 = vmatprep.subr.mxu0 0.0
        %321 = vmatpush1.msra.mxu0 0.0
        %322 = vmatprep.subr.mxu0 0.0
        %323 = vmatpush1.msra.mxu0 0.0
        %324 = vmatprep.subr.mxu0 0.0
        %325 = vmatpush1.msra.mxu0 0.0
        %326 = vmatprep.mubr.f32.mxu0 0.0
        %327 = vmatmul.mubr.f32.gmra.mrb[0].mxu0 %v260
        %v328 = vpop.f32.mrb[0].mxu0
        %v329 = vadd.f32 0.0, %v328
        %v330 = vpop.f32.mrb[0].mxu0
        %v331 = vadd.f32 0.0, %v330
        %332 = vdwg.mxu0
        %v333 = vmul.f32 %v232, %v232
        %v334 = vmul.f32 %v233, %v233
        %v335 = vmul.f32 %v234, %v234
        %v336 = vmul.f32 %v235, %v235
        %v337 = vmul.f32 %v236, %v236
        %v338 = vmul.f32 %v237, %v237
        %v339 = vmul.f32 %v238, %v238
        %v340 = vmul.f32 %v239, %v239
        %341 = vmatprep.subr.mxu0 %v334
        %342 = vmatpush1.msra.mxu0 %v333
        %343 = vmatprep.subr.mxu0 %v336
        %344 = vmatpush1.msra.mxu0 %v335
        %345 = vmatprep.subr.mxu0 %v338
        %346 = vmatpush1.msra.mxu0 %v337
        %347 = vmatprep.subr.mxu0 %v340
        %348 = vmatpush1.msra.mxu0 %v339
        %349 = vmatprep.subr.mxu0 0.0
        %350 = vmatpush1.msra.mxu0 0.0
        %351 = vmatprep.subr.mxu0 0.0
        %352 = vmatpush1.msra.mxu0 0.0
        %353 = vmatprep.subr.mxu0 0.0
        %354 = vmatpush1.msra.mxu0 0.0
        %355 = vmatprep.subr.mxu0 0.0
        %356 = vmatpush1.msra.mxu0 0.0
        %357 = vmatprep.subr.mxu0 0.0
        %358 = vmatpush1.msra.mxu0 0.0
        %359 = vmatprep.subr.mxu0 0.0
        %360 = vmatpush1.msra.mxu0 0.0
        %361 = vmatprep.subr.mxu0 0.0
        %362 = vmatpush1.msra.mxu0 0.0
        %363 = vmatprep.subr.mxu0 0.0
        %364 = vmatpush1.msra.mxu0 0.0
        %365 = vmatprep.subr.mxu0 0.0
        %366 = vmatpush1.msra.mxu0 0.0
        %367 = vmatprep.subr.mxu0 0.0
        %368 = vmatpush1.msra.mxu0 0.0
        %369 = vmatprep.subr.mxu0 0.0
        %370 = vmatpush1.msra.mxu0 0.0
        %371 = vmatprep.subr.mxu0 0.0
        %372 = vmatpush1.msra.mxu0 0.0
        %373 = vmatprep.subr.mxu0 0.0
        %374 = vmatpush1.msra.mxu0 0.0
        %375 = vmatprep.subr.mxu0 0.0
        %376 = vmatpush1.msra.mxu0 0.0
        %377 = vmatprep.subr.mxu0 0.0
        %378 = vmatpush1.msra.mxu0 0.0
        %379 = vmatprep.subr.mxu0 0.0
        %380 = vmatpush1.msra.mxu0 0.0
        %381 = vmatprep.subr.mxu0 0.0
        %382 = vmatpush1.msra.mxu0 0.0
        %383 = vmatprep.subr.mxu0 0.0
        %384 = vmatpush1.msra.mxu0 0.0
        %385 = vmatprep.subr.mxu0 0.0
        %386 = vmatpush1.msra.mxu0 0.0
        %387 = vmatprep.subr.mxu0 0.0
        %388 = vmatpush1.msra.mxu0 0.0
        %389 = vmatprep.subr.mxu0 0.0
        %390 = vmatpush1.msra.mxu0 0.0
        %391 = vmatprep.subr.mxu0 0.0
        %392 = vmatpush1.msra.mxu0 0.0
        %393 = vmatprep.subr.mxu0 0.0
        %394 = vmatpush1.msra.mxu0 0.0
        %395 = vmatprep.subr.mxu0 0.0
        %396 = vmatpush1.msra.mxu0 0.0
        %397 = vmatprep.subr.mxu0 0.0
        %398 = vmatpush1.msra.mxu0 0.0
        %399 = vmatprep.subr.mxu0 0.0
        %400 = vmatpush1.msra.mxu0 0.0
        %401 = vmatprep.subr.mxu0 0.0
        %402 = vmatpush1.msra.mxu0 0.0
        %403 = vmatprep.subr.mxu0 0.0
        %404 = vmatpush1.msra.mxu0 0.0
        %405 = vmatprep.mubr.f32.mxu0 0.0
        %406 = vmatmul.mubr.f32.gmra.mrb[0].mxu0 %v260
        %v407 = vpop.f32.mrb[0].mxu0
        %v408 = vadd.f32 0.0, %v407
        %v409 = vpop.f32.mrb[0].mxu0
        %v410 = vadd.f32 0.0, %v409
        %411 = vdwg.mxu0
        %v412 = vmul.f32 %v240, %v240
        %v413 = vmul.f32 %v241, %v241
        %v414 = vmul.f32 %v242, %v242
        %v415 = vmul.f32 %v243, %v243
        %v416 = vmul.f32 %v244, %v244
        %v417 = vmul.f32 %v245, %v245
        %v418 = vmul.f32 %v246, %v246
        %v419 = vmul.f32 %v247, %v247
        %420 = vmatprep.subr.mxu0 %v413
        %421 = vmatpush1.msra.mxu0 %v412
        %422 = vmatprep.subr.mxu0 %v415
        %423 = vmatpush1.msra.mxu0 %v414
        %424 = vmatprep.subr.mxu0 %v417
        %425 = vmatpush1.msra.mxu0 %v416
        %426 = vmatprep.subr.mxu0 %v419
        %427 = vmatpush1.msra.mxu0 %v418
        %428 = vmatprep.subr.mxu0 0.0
        %429 = vmatpush1.msra.mxu0 0.0
        %430 = vmatprep.subr.mxu0 0.0
        %431 = vmatpush1.msra.mxu0 0.0
        %432 = vmatprep.subr.mxu0 0.0
        %433 = vmatpush1.msra.mxu0 0.0
        %434 = vmatprep.subr.mxu0 0.0
        %435 = vmatpush1.msra.mxu0 0.0
        %436 = vmatprep.subr.mxu0 0.0
        %437 = vmatpush1.msra.mxu0 0.0
        %438 = vmatprep.subr.mxu0 0.0
        %439 = vmatpush1.msra.mxu0 0.0
        %440 = vmatprep.subr.mxu0 0.0
        %441 = vmatpush1.msra.mxu0 0.0
        %442 = vmatprep.subr.mxu0 0.0
        %443 = vmatpush1.msra.mxu0 0.0
        %444 = vmatprep.subr.mxu0 0.0
        %445 = vmatpush1.msra.mxu0 0.0
        %446 = vmatprep.subr.mxu0 0.0
        %447 = vmatpush1.msra.mxu0 0.0
        %448 = vmatprep.subr.mxu0 0.0
        %449 = vmatpush1.msra.mxu0 0.0
        %450 = vmatprep.subr.mxu0 0.0
        %451 = vmatpush1.msra.mxu0 0.0
        %452 = vmatprep.subr.mxu0 0.0
        %453 = vmatpush1.msra.mxu0 0.0
        %454 = vmatprep.subr.mxu0 0.0
        %455 = vmatpush1.msra.mxu0 0.0
        %456 = vmatprep.subr.mxu0 0.0
        %457 = vmatpush1.msra.mxu0 0.0
        %458 = vmatprep.subr.mxu0 0.0
        %459 = vmatpush1.msra.mxu0 0.0
        %460 = vmatprep.subr.mxu0 0.0
        %461 = vmatpush1.msra.mxu0 0.0
        %462 = vmatprep.subr.mxu0 0.0
        %463 = vmatpush1.msra.mxu0 0.0
        %464 = vmatprep.subr.mxu0 0.0
        %465 = vmatpush1.msra.mxu0 0.0
        %466 = vmatprep.subr.mxu0 0.0
        %467 = vmatpush1.msra.mxu0 0.0
        %468 = vmatprep.subr.mxu0 0.0
        %469 = vmatpush1.msra.mxu0 0.0
        %470 = vmatprep.subr.mxu0 0.0
        %471 = vmatpush1.msra.mxu0 0.0
        %472 = vmatprep.subr.mxu0 0.0
        %473 = vmatpush1.msra.mxu0 0.0
        %474 = vmatprep.subr.mxu0 0.0
        %475 = vmatpush1.msra.mxu0 0.0
        %476 = vmatprep.subr.mxu0 0.0
        %477 = vmatpush1.msra.mxu0 0.0
        %478 = vmatprep.subr.mxu0 0.0
        %479 = vmatpush1.msra.mxu0 0.0
        %480 = vmatprep.subr.mxu0 0.0
        %481 = vmatpush1.msra.mxu0 0.0
        %482 = vmatprep.subr.mxu0 0.0
        %483 = vmatpush1.msra.mxu0 0.0
        %484 = vmatprep.mubr.f32.mxu0 0.0
        %485 = vmatmul.mubr.f32.gmra.mrb[0].mxu0 %v260
        %v486 = vpop.f32.mrb[0].mxu0
        %v487 = vadd.f32 0.0, %v486
        %v488 = vpop.f32.mrb[0].mxu0
        %v489 = vadd.f32 0.0, %v488
        %490 = vdwg.mxu0
        %v491 = vmul.f32 %v408, %v487
        %v492 = vmul.f32 %v410, %v489
        %v493 = vmax.f32 %v491, 1e-16
        %v494 = vmax.f32 %v492, 1e-16
        %v495 = vrsqrt.pop %v493
        %v496 = vrsqrt.pop %v494
        %v497 = vmul.f32 %v329, %v495
        %v498 = vmul.f32 %v331, %v496
        %vm499 = vcmask 1043456
        %v500 = vsel %vm499, %v497, 0.0
        %v501 = vrot.slane %v500, 4
        %v502 = vadd.f32 %v500, %v501
        %v503 = vrot.slane %v502, 2
        %v504 = vadd.f32 %v502, %v503
        %v505 = vrot.slane %v504, 1
        %v506 = vadd.f32 %v504, %v505
        %v507 = vsel %vm499, %v498, 0.0
        %v508 = vrot.slane %v507, 4
        %v509 = vadd.f32 %v507, %v508
        %v510 = vrot.slane %v509, 2
        %v511 = vadd.f32 %v509, %v510
        %v512 = vrot.slane %v511, 1
        %v513 = vadd.f32 %v511, %v512
        %v514 = vrcp.pop 4.0
        %v515 = vmul.f32 %v506, %v514
        %v516 = vmul.f32 %v513, %v514
        %vm517 = vcmp.lt.f32.partialorder %v515, 0.1
        %vm518 = vcmp.lt.f32.partialorder %v516, 0.1
        %v519 = vsel %vm517, 0.0, %v515
        %v520 = vsel %vm518, 0.0, %v516
        %v523 = vcombine.low %v519, %v520
        %v525 = vunpack.c.l.s4 1966171168
        %v526 = vunpack.c.0.s8 %v525
        %v527 = vlaneseq
        %v528 = vshrl.u32 %v527, 7
        %v529 = vsub.s32 %v526, %v528
        %v530 = vrot.slane %v523, %v529
        %v532 = vunpack.c.l.s4 1966171168
        %v533 = vunpack.c.0.s8 %v532
        %v534 = vlaneseq
        %v535 = vshrl.u32 %v534, 7
        %v536 = vsub.s32 %v533, %v535
        %v537 = vrot.slane %v530, %v536
        %v539 = vlaneseq
        %vm540 = vcmp.ge.s32.totalorder %v539, 0
        %vm541 = vcmp.lt.s32.totalorder %v539, 256
        %vm542 = vmand %vm540, %vm541
        %543 = vst.msk [vmem:[%s228] sm:$0x3] %vm542, %v537
        %s544 = sand.u32 %s104, 1
        %s545 = scalar_lea.sflag [#allocation4], %s544
        %s546 = sand.u32 %s104, 1
        %s547 = smul.addr %s546, 2
        %s548 = scalar_lea.vmem [#allocation7], %s547
        // Predicated region
        $region41: #{tpu_custom_call.1} parent=31 // pred_check
          %p549 = pneg %p114
        $region42: #{tpu_custom_call.1} parent=31 // pred_check_branch
          %551 = sbr.rel (%p549) target = $region44
        $region43: #{tpu_custom_call.1} parent=31 // pred_region
          %s552 = smul.u32 2, %s23
          %s554 = ssub.s32 32, 32
          %555 = vsyncadd %s545, %s554
          %s556 = smul.addr %s552, 16
          %s557 = scalar_lea.hbm %s3, %s556
          %s559 = sshll.u32 %s548, 4
          %s560 = int_to_ptr.vmem [resolvable:$true] %s559
          %562 = dma.vmem_to_hbm [thread:$0]  %s560, 32, %s557, %s545
        $region44: #{tpu_custom_call.1} parent=31 // pred_fallthru
          _
      $region32: #{tpu_custom_call.1} parent=5 // pred_fallthru
        _
      %p563 = scmp.le.s32.totalorder 2, %s18
      // Predicated region
      $region45: #{tpu_custom_call.1} parent=5 // pred_check
        %p564 = pneg %p563
      $region46: #{tpu_custom_call.1} parent=5 // pred_check_branch
        %566 = sbr.rel (%p564) target = $region48
      $region47: #{tpu_custom_call.1} parent=5 // pred_region
        %s567 = ssub.s32 %s18, 2
        // Predicated region
        $region49: #{tpu_custom_call.1} parent=47 // pred_check
          %p568 = pneg %p120
        $region50: #{tpu_custom_call.1} parent=47 // pred_check_branch
          %570 = sbr.rel (%p568) target = $region52
        $region51: #{tpu_custom_call.1} parent=47 // pred_region
          %s571 = sand.u32 %s105, 1
          %s572 = scalar_lea.sflag [#allocation4], %s571
          %s573 = sand.u32 %s105, 1
          %s574 = smul.addr %s573, 2
          %s575 = scalar_lea.vmem [#allocation7], %s574
          %576 = dma.done %s572, 32
        $region52: #{tpu_custom_call.1} parent=47 // pred_fallthru
          _
      $region48: #{tpu_custom_call.1} parent=5 // pred_fallthru
        _
    $region6: #{tpu_custom_call.1} parent=1 // loop_footer
      %s22 = sadd.s32 1, %s18
    $region7: #{tpu_custom_call.1} parent=1 // loop_footer_branch
      %17 = sbr.rel target = $region3
    $region8: #{tpu_custom_call.1} parent=1 // loop_exit
      _
    %577 = vsyncpa [#allocation3], 1
    %s578 = scalar_lea.sflag [#allocation3], 1
    %579 = vsyncpa %s578, 1
    %580 = vsyncpa [#allocation6], 1
    %s581 = scalar_lea.sflag [#allocation6], 1
    %582 = vsyncpa %s581, 1
    %583 = vsyncpa [#allocation4], 1
    %s584 = scalar_lea.sflag [#allocation4], 1
    %585 = vsyncpa %s584, 1

</llo_original>
